<compile_context>
chip_gen: v5e
topology: v5e:2x2
jax: 0.10.0
libtpu: 0.0.40
codegen_flags: <defaults>
</compile_context>

<pallas_src>
import jax
import jax.numpy as jnp
from jax.experimental import pallas as pl
from jax.experimental.pallas import tpu as pltpu

D_MODEL = 128
D_FF = 1024
EPS = 1e-6   # matches nn.LayerNorm(d_model, eps=1e-06) in Model.py


def _ffn_ln_kernel(x_ref, w1_ref, w2_ref, gamma_ref, beta_ref, o_ref):
    x = x_ref[...].astype(jnp.float32)                       # (tm, d_model) f32

    # Position-wise feed-forward on the MXU: bf16 inputs, f32 accumulation.
    h = jnp.dot(x.astype(jnp.bfloat16), w1_ref[...],
                preferred_element_type=jnp.float32)           # (tm, d_ff)
    h = jnp.maximum(h, 0.0).astype(jnp.bfloat16)              # ReLU -> bf16
    y = jnp.dot(h, w2_ref[...],
                preferred_element_type=jnp.float32)           # (tm, d_model)

    # Residual add (f32).
    y = y + x

    # LayerNorm over d_model, eps=1e-6, affine.  Single-pass stats: the two
    # cross-lane reductions are independent (XLU), var = E[y^2] - mean^2.
    inv_n = jnp.float32(1.0 / D_MODEL)
    mean = jnp.sum(y, axis=-1, keepdims=True) * inv_n
    mean_sq = jnp.sum(y * y, axis=-1, keepdims=True) * inv_n
    var = mean_sq - mean * mean
    inv = jax.lax.rsqrt(var + EPS)                            # EUP
    scale = inv * gamma_ref[...]                              # (tm,1)*(1,dm)
    o_ref[...] = ((y - mean) * scale + beta_ref[...]).astype(o_ref.dtype)


def prepare_ffn_params(w1, w2, gamma, beta):
    """One-time parameter prep (hoisted out of the per-call path)."""
    return (w1.astype(jnp.bfloat16),                 # (d_model, d_ff)
            w2.astype(jnp.bfloat16),                 # (d_ff, d_model)
            gamma.reshape(1, D_MODEL).astype(jnp.float32),
            beta.reshape(1, D_MODEL).astype(jnp.float32))


def _choose_row_tile(rows_p, tm_max):
    """Pick the row-tile size (multiple of 8).

    Priorities:
      * <= tm_max rows per tile (bounds the f32 (tm, d_ff) VMEM intermediate),
      * >= 2 tiles whenever there is enough work (v7x megacore sharding of the
        "parallel" grid axis),
      * an exact divisor of rows_p on the common path (no pad / slice copies),
      * tiles >= 256 rows so the MXU M dimension stays full and per-step
        overhead is amortized.
    """
    tm_max = max(8, (tm_max // 8) * 8)
    if rows_p <= tm_max and rows_p < 512:
        return rows_p                                 # single tile, no pad
    if rows_p <= 2 * tm_max:
        return ((rows_p + 15) // 16) * 8              # exactly 2 tiles
    cand = tm_max
    while cand >= 256:                                # exact divisor search
        if rows_p % cand == 0:
            return cand
        cand -= 8
    return tm_max                                     # fall back: pad tail


def poswise_feed_forward_net(x, params, *, tm=512):
    """x: [batch, seq, d_model] (f32); params from prepare_ffn_params().
    Returns [batch, seq, d_model]."""
    w1_bf, w2_bf, gamma2, beta2 = params
    b, s, dm = x.shape
    assert dm == D_MODEL
    rows = b * s
    rows_p = ((rows + 7) // 8) * 8                    # sublane-align row count

    tm_eff = _choose_row_tile(rows_p, tm)
    n_tiles = pl.cdiv(rows_p, tm_eff)
    padded_rows = n_tiles * tm_eff

    x2 = x.reshape(rows, dm)
    if x2.dtype != jnp.float32:
        x2 = x2.astype(jnp.float32)
    if padded_rows != rows:                           # rare path only
        x2 = jnp.pad(x2, ((0, padded_rows - rows), (0, 0)))

    vmem_limit = None
    if tm_eff >= 1024:
        # The f32 (tm, d_ff) intermediate alone is tm*4 KiB; raise the scoped
        # limit for big tiles (matters on v5e whose default is 16 MiB).
        vmem_limit = 32 * 1024 * 1024

    out = pl.pallas_call(
        _ffn_ln_kernel,
        out_shape=jax.ShapeDtypeStruct((padded_rows, dm), x.dtype),
        grid_spec=pltpu.PrefetchScalarGridSpec(
            num_scalar_prefetch=0,
            grid=(n_tiles,),
            in_specs=[
                # x row tile: pipelined / double-buffered across the grid.
                pl.BlockSpec((tm_eff, dm), lambda i: (i, 0)),
                # Weights + LN params: fully VMEM-resident, no double buffer.
                pl.BlockSpec(memory_space=pltpu.MemorySpace.VMEM),   # W1 bf16
                pl.BlockSpec(memory_space=pltpu.MemorySpace.VMEM),   # W2 bf16
                pl.BlockSpec(memory_space=pltpu.MemorySpace.VMEM),   # gamma
                pl.BlockSpec(memory_space=pltpu.MemorySpace.VMEM),   # beta
            ],
            out_specs=pl.BlockSpec((tm_eff, dm), lambda i: (i, 0)),
        ),
        compiler_params=pltpu.CompilerParams(
            dimension_semantics=("parallel",),
            vmem_limit_bytes=vmem_limit),
    )(x2, w1_bf, w2_bf, gamma2, beta2)

    if padded_rows != rows:
        out = out[:rows]
    return out.reshape(b, s, dm)


def _reference(x, w1, w2, gamma, beta):
    y = jnp.maximum(x.astype(jnp.float32) @ w1, 0.0) @ w2 + x
    mean = jnp.mean(y, axis=-1, keepdims=True)
    var = jnp.mean((y - mean) ** 2, axis=-1, keepdims=True)
    return (y - mean) * jax.lax.rsqrt(var + EPS) * gamma + beta


if __name__ == "__main__":
    key = jax.random.PRNGKey(0)
    k_w1, k_w2, k_g, k_b, k1, k2, k3, k4 = jax.random.split(key, 8)

    # Deterministic synthetic parameters (both nn.Linear have bias=False).
    w1 = jax.random.normal(k_w1, (D_MODEL, D_FF), dtype=jnp.float32) * 0.02
    w2 = jax.random.normal(k_w2, (D_FF, D_MODEL), dtype=jnp.float32) * 0.02
    gamma = 1.0 + 0.01 * jax.random.normal(k_g, (D_MODEL,), dtype=jnp.float32)
    beta = 0.01 * jax.random.normal(k_b, (D_MODEL,), dtype=jnp.float32)
    params = prepare_ffn_params(w1, w2, gamma, beta)   # hoisted, one-time

    def check(x, tag):
        out = jax.block_until_ready(poswise_feed_forward_net(x, params))
        ref = _reference(x, w1, w2, gamma, beta)
        assert out.shape == x.shape, tag
        # bf16 matmul inputs / f32 accumulation -> looser tolerance than f32.
        assert jnp.allclose(out, ref, atol=1e-2, rtol=1e-2), f"mismatch ({tag})"

    # Small shape matching the module's forward: [batch, seq, d_model].
    check(jax.random.normal(k1, (2, 8, D_MODEL), dtype=jnp.float32), "small")
    # Medium shape: 640 rows -> exactly 2 tiles of 320, no padding.
    check(jax.random.normal(k2, (4, 160, D_MODEL), dtype=jnp.float32), "medium")
    # Awkward row count: 210 rows -> single 216-row tile, pad/slice fallback.
    check(jax.random.normal(k3, (3, 70, D_MODEL), dtype=jnp.float32), "padded")
    # Larger shape: 4096 rows -> exact-divisor path, 8 tiles of 512, no pad.
    check(jax.random.normal(k4, (8, 512, D_MODEL), dtype=jnp.float32), "large")

    print("KERNEL_OK")
</pallas_src>

<mosaic_0001>
module attributes {stable_mosaic.version = 11 : i64} {
  func.func @_ffn_ln_kernel(%arg0: i32, %arg1: memref<16x128xf32, #tpu.memory_space<vmem>>, %arg2: memref<128x1024xbf16, #tpu.memory_space<vmem>>, %arg3: memref<1024x128xbf16, #tpu.memory_space<vmem>>, %arg4: memref<1x128xf32, #tpu.memory_space<vmem>>, %arg5: memref<1x128xf32, #tpu.memory_space<vmem>>, %arg6: memref<16x128xf32, #tpu.memory_space<vmem>>) attributes {dimension_semantics = [#tpu.dimension_semantics<parallel>], iteration_bounds = array<i64: 1>, scalar_prefetch = 0 : i64, scratch_operands = 0 : i64, tpu.core_type = #tpu.core_type<tc>, window_params = [{transform_indices = @transform_0, window_bounds = array<i64: 16, 128>}, {pipeline_mode = #tpu.pipeline_mode<synchronous>, transform_indices = @transform_1, window_bounds = array<i64: 128, 1024>}, {pipeline_mode = #tpu.pipeline_mode<synchronous>, transform_indices = @transform_2, window_bounds = array<i64: 1024, 128>}, {pipeline_mode = #tpu.pipeline_mode<synchronous>, transform_indices = @transform_3, window_bounds = array<i64: 1, 128>}, {pipeline_mode = #tpu.pipeline_mode<synchronous>, transform_indices = @transform_4, window_bounds = array<i64: 1, 128>}, {transform_indices = @transform_5, window_bounds = array<i64: 16, 128>}]} {
    %c0 = arith.constant 0 : index
    %c0_0 = arith.constant 0 : index
    %0 = vector.load %arg1[%c0, %c0_0] : memref<16x128xf32, #tpu.memory_space<vmem>>, vector<16x128xf32>
    %1 = arith.truncf %0 : vector<16x128xf32> to vector<16x128xbf16>
    %c0_1 = arith.constant 0 : index
    %c0_2 = arith.constant 0 : index
    %2 = vector.load %arg2[%c0_1, %c0_2] : memref<128x1024xbf16, #tpu.memory_space<vmem>>, vector<128x1024xbf16>
    %cst = arith.constant dense<0.000000e+00> : vector<16x1024xf32>
    %3 = tpu.matmul %1, %2, %cst {dimension_numbers = #tpu.dot_dimension_numbers<[1], [0], [0], [1], [0, 0, 1, 1], [], []>} : vector<16x128xbf16>, vector<128x1024xbf16>, vector<16x1024xf32> -> vector<16x1024xf32>
    %cst_3 = arith.constant 0.000000e+00 : f32
    %4 = vector.broadcast %cst_3 : f32 to vector<16x1024xf32>
    %5 = arith.maximumf %3, %4 : vector<16x1024xf32>
    %6 = arith.truncf %5 : vector<16x1024xf32> to vector<16x1024xbf16>
    %c0_4 = arith.constant 0 : index
    %c0_5 = arith.constant 0 : index
    %7 = vector.load %arg3[%c0_4, %c0_5] : memref<1024x128xbf16, #tpu.memory_space<vmem>>, vector<1024x128xbf16>
    %cst_6 = arith.constant dense<0.000000e+00> : vector<16x128xf32>
    %8 = tpu.matmul %6, %7, %cst_6 {dimension_numbers = #tpu.dot_dimension_numbers<[1], [0], [0], [1], [0, 0, 1, 1], [], []>} : vector<16x1024xbf16>, vector<1024x128xbf16>, vector<16x128xf32> -> vector<16x128xf32>
    %9 = arith.addf %8, %0 : vector<16x128xf32>
    %cst_7 = arith.constant dense<0.000000e+00> : vector<16xf32>
    %10 = vector.multi_reduction <add>, %9, %cst_7 [1] : vector<16x128xf32> to vector<16xf32>
    %11 = vector.shape_cast %10 : vector<16xf32> to vector<16x1xf32>
    %cst_8 = arith.constant 7.812500e-03 : f32
    %12 = vector.broadcast %cst_8 : f32 to vector<16x1xf32>
    %13 = arith.mulf %11, %12 : vector<16x1xf32>
    %14 = arith.mulf %9, %9 : vector<16x128xf32>
    %cst_9 = arith.constant dense<0.000000e+00> : vector<16xf32>
    %15 = vector.multi_reduction <add>, %14, %cst_9 [1] : vector<16x128xf32> to vector<16xf32>
    %16 = vector.shape_cast %15 : vector<16xf32> to vector<16x1xf32>
    %cst_10 = arith.constant 7.812500e-03 : f32
    %17 = vector.broadcast %cst_10 : f32 to vector<16x1xf32>
    %18 = arith.mulf %16, %17 : vector<16x1xf32>
    %19 = arith.mulf %13, %13 : vector<16x1xf32>
    %20 = arith.subf %18, %19 : vector<16x1xf32>
    %cst_11 = arith.constant 9.99999997E-7 : f32
    %21 = vector.broadcast %cst_11 : f32 to vector<16x1xf32>
    %22 = arith.addf %20, %21 : vector<16x1xf32>
    %23 = math.rsqrt %22 : vector<16x1xf32>
    %c0_12 = arith.constant 0 : index
    %c0_13 = arith.constant 0 : index
    %24 = vector.load %arg4[%c0_12, %c0_13] : memref<1x128xf32, #tpu.memory_space<vmem>>, vector<1x128xf32>
    %25 = vector.broadcast %23 : vector<16x1xf32> to vector<16x128xf32>
    %26 = vector.broadcast %24 : vector<1x128xf32> to vector<16x128xf32>
    %27 = arith.mulf %25, %26 : vector<16x128xf32>
    %28 = vector.broadcast %13 : vector<16x1xf32> to vector<16x128xf32>
    %29 = arith.subf %9, %28 : vector<16x128xf32>
    %30 = arith.mulf %29, %27 : vector<16x128xf32>
    %c0_14 = arith.constant 0 : index
    %c0_15 = arith.constant 0 : index
    %31 = vector.load %arg5[%c0_14, %c0_15] : memref<1x128xf32, #tpu.memory_space<vmem>>, vector<1x128xf32>
    %32 = vector.broadcast %31 : vector<1x128xf32> to vector<16x128xf32>
    %33 = arith.addf %30, %32 : vector<16x128xf32>
    %c0_16 = arith.constant 0 : index
    %c0_17 = arith.constant 0 : index
    %34 = vector.load %arg6[%c0_16, %c0_17] : memref<16x128xf32, #tpu.memory_space<vmem>>, vector<16x128xf32>
    tpu.vector_store %arg6[%c0_16, %c0_17], %33 {strides = array<i32>} : memref<16x128xf32, #tpu.memory_space<vmem>>, vector<16x128xf32>,
    return
  }
  func.func @transform_0(%arg0: i32) -> (i32, i32) {
    %c0_i32 = arith.constant 0 : i32
    %c0_i32_0 = arith.constant 0 : i32
    return %arg0, %c0_i32 : i32, i32
  }
  func.func @transform_1(%arg0: i32) -> (i32, i32) {
    %c0_i32 = arith.constant 0 : i32
    %c0_i32_0 = arith.constant 0 : i32
    %c0_i32_1 = arith.constant 0 : i32
    return %c0_i32, %c0_i32_0 : i32, i32
  }
  func.func @transform_2(%arg0: i32) -> (i32, i32) {
    %c0_i32 = arith.constant 0 : i32
    %c0_i32_0 = arith.constant 0 : i32
    %c0_i32_1 = arith.constant 0 : i32
    return %c0_i32, %c0_i32_0 : i32, i32
  }
  func.func @transform_3(%arg0: i32) -> (i32, i32) {
    %c0_i32 = arith.constant 0 : i32
    %c0_i32_0 = arith.constant 0 : i32
    %c0_i32_1 = arith.constant 0 : i32
    return %c0_i32, %c0_i32_0 : i32, i32
  }
  func.func @transform_4(%arg0: i32) -> (i32, i32) {
    %c0_i32 = arith.constant 0 : i32
    %c0_i32_0 = arith.constant 0 : i32
    %c0_i32_1 = arith.constant 0 : i32
    return %c0_i32, %c0_i32_0 : i32, i32
  }
  func.func @transform_5(%arg0: i32) -> (i32, i32) {
    %c0_i32 = arith.constant 0 : i32
    %c0_i32_0 = arith.constant 0 : i32
    return %arg0, %c0_i32 : i32, i32
  }
}

</mosaic_0001>

<llo_original>
// kernel: tpu_custom_call.1
$region0: #{tpu_custom_call.1}
  #allocation0 [shape = 'u32[]', space=smem, size = 0x4, offset = 0x4, fixed_abs, tag = 'smem constant byte address 0x4 - core index']
  #allocation1 [shape = 'u32[72,128]{1,0:T(1,128)}', space=vmem, size = 0x9000, scoped, tag = 'internal scratch']
  %s0 = inlined_call_operand.hbm [shape: f32[16,128], index: 0, kind: input, shape index: {}]
  %s1 = inlined_call_operand.hbm [shape: bf16[128,1024], index: 1, kind: input, shape index: {}]
  %s2 = inlined_call_operand.hbm [shape: bf16[1024,128], index: 2, kind: input, shape index: {}]
  %s3 = inlined_call_operand.vmem [shape: f32[1,128], index: 3, kind: input, shape index: {}]
  %s4 = inlined_call_operand.vmem [shape: f32[1,128], index: 4, kind: input, shape index: {}]
  %s5 = inlined_call_operand.hbm [shape: f32[16,128], index: 5, kind: output, shape index: {}]
  %s6 = sld [smem:[#allocation0]]
  $region42: #{tpu_custom_call.1} parent=0
    _
  %s8 = ssub.s32 1, %s6
  %s9 = scalar_select 0, %s8, %s6
  $region1: #{tpu_custom_call.1} parent=0
    #allocation2 [shape = 'u8[8192]{0}', space=vmem, size = 0x2000, scoped, tag = 'input window, operand 0, single buffered']
    #allocation3 [shape = 's32[1]{0}', space=sflag, size = 0x4, scoped, tag = 'scoped memory for tpu_custom_call.1']
    #allocation4 [shape = 's32[1]{0}', space=sflag, size = 0x4, scoped, tag = 'scoped memory for tpu_custom_call.1']
    #allocation5 [shape = 'u8[262144]{0}', space=vmem, size = 0x40000, scoped, tag = 'input window, operand 1, single buffered']
    #allocation6 [shape = 's32[1]{0}', space=sflag, size = 0x4, scoped, tag = 'scoped memory for tpu_custom_call.1']
    #allocation7 [shape = 'u8[262144]{0}', space=vmem, size = 0x40000, scoped, tag = 'input window, operand 2, single buffered']
    #allocation8 [shape = 'u8[8192]{0}', space=vmem, size = 0x2000, scoped, tag = 'output window, operand 0, single buffered']
    %10 = vsyncpa [#allocation3], 0
    %11 = vsyncpa [#allocation6], 0
    %12 = vsyncpa [#allocation4], 0
    // Predicated region
    $region2: #{tpu_custom_call.1} parent=1 // pred_check
      _
    $region3: #{tpu_custom_call.1} parent=1 // pred_check_branch
      %14 = sbr.rel (0) target = $region5
    $region4: #{tpu_custom_call.1} parent=1 // pred_region
      %16 = vsyncadd [#allocation3], 0
      %s17 = sshll.u32 %s0, 4
      %s18 = int_to_ptr.hbm [resolvable:$true] %s17
      %s19 = sshll.u32 [#allocation2], 4
      %s20 = int_to_ptr.vmem [resolvable:$true] %s19
      %25 = dma.hbm_to_vmem [thread:$0]  %s18, 256, %s20, [#allocation3], 128, 128, 8
    $region5: #{tpu_custom_call.1} parent=1 // pred_fallthru
      _
    // Predicated region
    $region6: #{tpu_custom_call.1} parent=1 // pred_check
      _
    $region7: #{tpu_custom_call.1} parent=1 // pred_check_branch
      %27 = sbr.rel (0) target = $region9
    $region8: #{tpu_custom_call.1} parent=1 // pred_region
      %29 = vsyncadd [#allocation6], 0
      %s30 = sshll.u32 %s1, 4
      %s31 = int_to_ptr.hbm [resolvable:$true] %s30
      %s32 = sshll.u32 [#allocation5], 4
      %s33 = int_to_ptr.vmem [resolvable:$true] %s32
      %38 = dma.hbm_to_vmem [thread:$0]  %s31, 8192, %s33, [#allocation6], 512, 512, 32
    $region9: #{tpu_custom_call.1} parent=1 // pred_fallthru
      _
    // Predicated region
    $region10: #{tpu_custom_call.1} parent=1 // pred_check
      _
    $region11: #{tpu_custom_call.1} parent=1 // pred_check_branch
      %40 = sbr.rel (0) target = $region13
    $region12: #{tpu_custom_call.1} parent=1 // pred_region
      %42 = vsyncadd [#allocation6], 0
      %s43 = sshll.u32 %s2, 4
      %s44 = int_to_ptr.hbm [resolvable:$true] %s43
      %s45 = sshll.u32 [#allocation7], 4
      %s46 = int_to_ptr.vmem [resolvable:$true] %s45
      %51 = dma.hbm_to_vmem [thread:$0]  %s44, 8192, %s46, [#allocation6], 64, 64, 4
    $region13: #{tpu_custom_call.1} parent=1 // pred_fallthru
      _
    // Predicated region
    $region14: #{tpu_custom_call.1} parent=1 // pred_check
      _
    $region15: #{tpu_custom_call.1} parent=1 // pred_check_branch
      %53 = sbr.rel (0) target = $region17
    $region16: #{tpu_custom_call.1} parent=1 // pred_region
      _
    $region17: #{tpu_custom_call.1} parent=1 // pred_fallthru
      _
    // Predicated region
    $region18: #{tpu_custom_call.1} parent=1 // pred_check
      _
    $region19: #{tpu_custom_call.1} parent=1 // pred_check_branch
      %55 = sbr.rel (0) target = $region21
    $region20: #{tpu_custom_call.1} parent=1 // pred_region
      _
    $region21: #{tpu_custom_call.1} parent=1 // pred_fallthru
      _
    // Predicated region
    $region22: #{tpu_custom_call.1} parent=1 // pred_check
      _
    $region23: #{tpu_custom_call.1} parent=1 // pred_check_branch
      %57 = sbr.rel (0) target = $region25
    $region24: #{tpu_custom_call.1} parent=1 // pred_region
      %59 = dma.done [#allocation3], 256
    $region25: #{tpu_custom_call.1} parent=1 // pred_fallthru
      _
    // Predicated region
    $region26: #{tpu_custom_call.1} parent=1 // pred_check
      _
    $region27: #{tpu_custom_call.1} parent=1 // pred_check_branch
      %61 = sbr.rel (0) target = $region29
    $region28: #{tpu_custom_call.1} parent=1 // pred_region
      %63 = dma.done [#allocation6], 8192
    $region29: #{tpu_custom_call.1} parent=1 // pred_fallthru
      _
    // Predicated region
    $region30: #{tpu_custom_call.1} parent=1 // pred_check
      _
    $region31: #{tpu_custom_call.1} parent=1 // pred_check_branch
      %65 = sbr.rel (0) target = $region33
    $region32: #{tpu_custom_call.1} parent=1 // pred_region
      %67 = dma.done [#allocation6], 8192
    $region33: #{tpu_custom_call.1} parent=1 // pred_fallthru
      _
    %v68 = vld [vmem:[#allocation2] sm:$0xff]
    %v69 = vld [vmem:[#allocation2 + $0x8] sm:$0xff]
    %v70 = vpack.c.bf16 %v69, %v68
    %v71 = vld [vmem:[#allocation5] sm:$0xff]
    %v72 = vld [vmem:[#allocation5 + $0x8] sm:$0xff]
    %v73 = vld [vmem:[#allocation5 + $0x10] sm:$0xff]
    %v74 = vld [vmem:[#allocation5 + $0x18] sm:$0xff]
    %v75 = vld [vmem:[#allocation5 + $0x20] sm:$0xff]
    %v76 = vld [vmem:[#allocation5 + $0x28] sm:$0xff]
    %v77 = vld [vmem:[#allocation5 + $0x30] sm:$0xff]
    %v78 = vld [vmem:[#allocation5 + $0x38] sm:$0xff]
    %v79 = vld [vmem:[#allocation5 + $0x40] sm:$0xff]
    %v80 = vld [vmem:[#allocation5 + $0x48] sm:$0xff]
    %v81 = vld [vmem:[#allocation5 + $0x50] sm:$0xff]
    %v82 = vld [vmem:[#allocation5 + $0x58] sm:$0xff]
    %v83 = vld [vmem:[#allocation5 + $0x60] sm:$0xff]
    %v84 = vld [vmem:[#allocation5 + $0x68] sm:$0xff]
    %v85 = vld [vmem:[#allocation5 + $0x70] sm:$0xff]
    %v86 = vld [vmem:[#allocation5 + $0x78] sm:$0xff]
    %v87 = vld [vmem:[#allocation5 + $0x80] sm:$0xff]
    %v88 = vld [vmem:[#allocation5 + $0x88] sm:$0xff]
    %v89 = vld [vmem:[#allocation5 + $0x90] sm:$0xff]
    %v90 = vld [vmem:[#allocation5 + $0x98] sm:$0xff]
    %v91 = vld [vmem:[#allocation5 + $0xa0] sm:$0xff]
    %v92 = vld [vmem:[#allocation5 + $0xa8] sm:$0xff]
    %v93 = vld [vmem:[#allocation5 + $0xb0] sm:$0xff]
    %v94 = vld [vmem:[#allocation5 + $0xb8] sm:$0xff]
    %v95 = vld [vmem:[#allocation5 + $0xc0] sm:$0xff]
    %v96 = vld [vmem:[#allocation5 + $0xc8] sm:$0xff]
    %v97 = vld [vmem:[#allocation5 + $0xd0] sm:$0xff]
    %v98 = vld [vmem:[#allocation5 + $0xd8] sm:$0xff]
    %v99 = vld [vmem:[#allocation5 + $0xe0] sm:$0xff]
    %v100 = vld [vmem:[#allocation5 + $0xe8] sm:$0xff]
    %v101 = vld [vmem:[#allocation5 + $0xf0] sm:$0xff]
    %v102 = vld [vmem:[#allocation5 + $0xf8] sm:$0xff]
    %v103 = vld [vmem:[#allocation5 + $0x100] sm:$0xff]
    %v104 = vld [vmem:[#allocation5 + $0x108] sm:$0xff]
    %v105 = vld [vmem:[#allocation5 + $0x110] sm:$0xff]
    %v106 = vld [vmem:[#allocation5 + $0x118] sm:$0xff]
    %v107 = vld [vmem:[#allocation5 + $0x120] sm:$0xff]
    %v108 = vld [vmem:[#allocation5 + $0x128] sm:$0xff]
    %v109 = vld [vmem:[#allocation5 + $0x130] sm:$0xff]
    %v110 = vld [vmem:[#allocation5 + $0x138] sm:$0xff]
    %v111 = vld [vmem:[#allocation5 + $0x140] sm:$0xff]
    %v112 = vld [vmem:[#allocation5 + $0x148] sm:$0xff]
    %v113 = vld [vmem:[#allocation5 + $0x150] sm:$0xff]
    %v114 = vld [vmem:[#allocation5 + $0x158] sm:$0xff]
    %v115 = vld [vmem:[#allocation5 + $0x160] sm:$0xff]
    %v116 = vld [vmem:[#allocation5 + $0x168] sm:$0xff]
    %v117 = vld [vmem:[#allocation5 + $0x170] sm:$0xff]
    %v118 = vld [vmem:[#allocation5 + $0x178] sm:$0xff]
    %v119 = vld [vmem:[#allocation5 + $0x180] sm:$0xff]
    %v120 = vld [vmem:[#allocation5 + $0x188] sm:$0xff]
    %v121 = vld [vmem:[#allocation5 + $0x190] sm:$0xff]
    %v122 = vld [vmem:[#allocation5 + $0x198] sm:$0xff]
    %v123 = vld [vmem:[#allocation5 + $0x1a0] sm:$0xff]
    %v124 = vld [vmem:[#allocation5 + $0x1a8] sm:$0xff]
    %v125 = vld [vmem:[#allocation5 + $0x1b0] sm:$0xff]
    %v126 = vld [vmem:[#allocation5 + $0x1b8] sm:$0xff]
    %v127 = vld [vmem:[#allocation5 + $0x1c0] sm:$0xff]
    %v128 = vld [vmem:[#allocation5 + $0x1c8] sm:$0xff]
    %v129 = vld [vmem:[#allocation5 + $0x1d0] sm:$0xff]
    %v130 = vld [vmem:[#allocation5 + $0x1d8] sm:$0xff]
    %v131 = vld [vmem:[#allocation5 + $0x1e0] sm:$0xff]
    %v132 = vld [vmem:[#allocation5 + $0x1e8] sm:$0xff]
    %v133 = vld [vmem:[#allocation5 + $0x1f0] sm:$0xff]
    %v134 = vld [vmem:[#allocation5 + $0x1f8] sm:$0xff]
    %v199 = vunpack.c.l.b16 %v71
    %v200 = vunpack.c.h.b16 %v71
    %v201 = vunpack.c.l.b16 %v72
    %v202 = vunpack.c.h.b16 %v72
    %v203 = vunpack.c.l.b16 %v73
    %v204 = vunpack.c.h.b16 %v73
    %v205 = vunpack.c.l.b16 %v74
    %v206 = vunpack.c.h.b16 %v74
    %v207 = vunpack.c.l.b16 %v75
    %v208 = vunpack.c.h.b16 %v75
    %v209 = vunpack.c.l.b16 %v76
    %v210 = vunpack.c.h.b16 %v76
    %v211 = vunpack.c.l.b16 %v77
    %v212 = vunpack.c.h.b16 %v77
    %v213 = vunpack.c.l.b16 %v78
    %v214 = vunpack.c.h.b16 %v78
    %v215 = vunpack.c.l.b16 %v79
    %v216 = vunpack.c.h.b16 %v79
    %v217 = vunpack.c.l.b16 %v80
    %v218 = vunpack.c.h.b16 %v80
    %v219 = vunpack.c.l.b16 %v81
    %v220 = vunpack.c.h.b16 %v81
    %v221 = vunpack.c.l.b16 %v82
    %v222 = vunpack.c.h.b16 %v82
    %v223 = vunpack.c.l.b16 %v83
    %v224 = vunpack.c.h.b16 %v83
    %v225 = vunpack.c.l.b16 %v84
    %v226 = vunpack.c.h.b16 %v84
    %v227 = vunpack.c.l.b16 %v85
    %v228 = vunpack.c.h.b16 %v85
    %v229 = vunpack.c.l.b16 %v86
    %v230 = vunpack.c.h.b16 %v86
    %v231 = vunpack.c.l.b16 %v87
    %v232 = vunpack.c.h.b16 %v87
    %v233 = vunpack.c.l.b16 %v88
    %v234 = vunpack.c.h.b16 %v88
    %v235 = vunpack.c.l.b16 %v89
    %v236 = vunpack.c.h.b16 %v89
    %v237 = vunpack.c.l.b16 %v90
    %v238 = vunpack.c.h.b16 %v90
    %v239 = vunpack.c.l.b16 %v91
    %v240 = vunpack.c.h.b16 %v91
    %v241 = vunpack.c.l.b16 %v92
    %v242 = vunpack.c.h.b16 %v92
    %v243 = vunpack.c.l.b16 %v93
    %v244 = vunpack.c.h.b16 %v93
    %v245 = vunpack.c.l.b16 %v94
    %v246 = vunpack.c.h.b16 %v94
    %v247 = vunpack.c.l.b16 %v95
    %v248 = vunpack.c.h.b16 %v95
    %v249 = vunpack.c.l.b16 %v96
    %v250 = vunpack.c.h.b16 %v96
    %v251 = vunpack.c.l.b16 %v97
    %v252 = vunpack.c.h.b16 %v97
    %v253 = vunpack.c.l.b16 %v98
    %v254 = vunpack.c.h.b16 %v98
    %v255 = vunpack.c.l.b16 %v99
    %v256 = vunpack.c.h.b16 %v99
    %v257 = vunpack.c.l.b16 %v100
    %v258 = vunpack.c.h.b16 %v100
    %v259 = vunpack.c.l.b16 %v101
    %v260 = vunpack.c.h.b16 %v101
    %v261 = vunpack.c.l.b16 %v102
    %v262 = vunpack.c.h.b16 %v102
    %v263 = vunpack.c.l.b16 %v103
    %v264 = vunpack.c.h.b16 %v103
    %v265 = vunpack.c.l.b16 %v104
    %v266 = vunpack.c.h.b16 %v104
    %v267 = vunpack.c.l.b16 %v105
    %v268 = vunpack.c.h.b16 %v105
    %v269 = vunpack.c.l.b16 %v106
    %v270 = vunpack.c.h.b16 %v106
    %v271 = vunpack.c.l.b16 %v107
    %v272 = vunpack.c.h.b16 %v107
    %v273 = vunpack.c.l.b16 %v108
    %v274 = vunpack.c.h.b16 %v108
    %v275 = vunpack.c.l.b16 %v109
    %v276 = vunpack.c.h.b16 %v109
    %v277 = vunpack.c.l.b16 %v110
    %v278 = vunpack.c.h.b16 %v110
    %v279 = vunpack.c.l.b16 %v111
    %v280 = vunpack.c.h.b16 %v111
    %v281 = vunpack.c.l.b16 %v112
    %v282 = vunpack.c.h.b16 %v112
    %v283 = vunpack.c.l.b16 %v113
    %v284 = vunpack.c.h.b16 %v113
    %v285 = vunpack.c.l.b16 %v114
    %v286 = vunpack.c.h.b16 %v114
    %v287 = vunpack.c.l.b16 %v115
    %v288 = vunpack.c.h.b16 %v115
    %v289 = vunpack.c.l.b16 %v116
    %v290 = vunpack.c.h.b16 %v116
    %v291 = vunpack.c.l.b16 %v117
    %v292 = vunpack.c.h.b16 %v117
    %v293 = vunpack.c.l.b16 %v118
    %v294 = vunpack.c.h.b16 %v118
    %v295 = vunpack.c.l.b16 %v119
    %v296 = vunpack.c.h.b16 %v119
    %v297 = vunpack.c.l.b16 %v120
    %v298 = vunpack.c.h.b16 %v120
    %v299 = vunpack.c.l.b16 %v121
    %v300 = vunpack.c.h.b16 %v121
    %v301 = vunpack.c.l.b16 %v122
    %v302 = vunpack.c.h.b16 %v122
    %v303 = vunpack.c.l.b16 %v123
    %v304 = vunpack.c.h.b16 %v123
    %v305 = vunpack.c.l.b16 %v124
    %v306 = vunpack.c.h.b16 %v124
    %v307 = vunpack.c.l.b16 %v125
    %v308 = vunpack.c.h.b16 %v125
    %v309 = vunpack.c.l.b16 %v126
    %v310 = vunpack.c.h.b16 %v126
    %v311 = vunpack.c.l.b16 %v127
    %v312 = vunpack.c.h.b16 %v127
    %v313 = vunpack.c.l.b16 %v128
    %v314 = vunpack.c.h.b16 %v128
    %v315 = vunpack.c.l.b16 %v129
    %v316 = vunpack.c.h.b16 %v129
    %v317 = vunpack.c.l.b16 %v130
    %v318 = vunpack.c.h.b16 %v130
    %v319 = vunpack.c.l.b16 %v131
    %v320 = vunpack.c.h.b16 %v131
    %v321 = vunpack.c.l.b16 %v132
    %v322 = vunpack.c.h.b16 %v132
    %v323 = vunpack.c.l.b16 %v133
    %v324 = vunpack.c.h.b16 %v133
    %v325 = vunpack.c.l.b16 %v134
    %v326 = vunpack.c.h.b16 %v134
    %v327 = vpack.c.b16 %v207, %v199
    %v328 = vpack.c.b16 %v208, %v200
    %v329 = vpack.c.b16 %v209, %v201
    %v330 = vpack.c.b16 %v210, %v202
    %v331 = vpack.c.b16 %v211, %v203
    %v332 = vpack.c.b16 %v212, %v204
    %v333 = vpack.c.b16 %v213, %v205
    %v334 = vpack.c.b16 %v214, %v206
    %v335 = vpack.c.b16 %v223, %v215
    %v336 = vpack.c.b16 %v224, %v216
    %v337 = vpack.c.b16 %v225, %v217
    %v338 = vpack.c.b16 %v226, %v218
    %v339 = vpack.c.b16 %v227, %v219
    %v340 = vpack.c.b16 %v228, %v220
    %v341 = vpack.c.b16 %v229, %v221
    %v342 = vpack.c.b16 %v230, %v222
    %v343 = vpack.c.b16 %v239, %v231
    %v344 = vpack.c.b16 %v240, %v232
    %v345 = vpack.c.b16 %v241, %v233
    %v346 = vpack.c.b16 %v242, %v234
    %v347 = vpack.c.b16 %v243, %v235
    %v348 = vpack.c.b16 %v244, %v236
    %v349 = vpack.c.b16 %v245, %v237
    %v350 = vpack.c.b16 %v246, %v238
    %v351 = vpack.c.b16 %v255, %v247
    %v352 = vpack.c.b16 %v256, %v248
    %v353 = vpack.c.b16 %v257, %v249
    %v354 = vpack.c.b16 %v258, %v250
    %v355 = vpack.c.b16 %v259, %v251
    %v356 = vpack.c.b16 %v260, %v252
    %v357 = vpack.c.b16 %v261, %v253
    %v358 = vpack.c.b16 %v262, %v254
    %v359 = vpack.c.b16 %v271, %v263
    %v360 = vpack.c.b16 %v272, %v264
    %v361 = vpack.c.b16 %v273, %v265
    %v362 = vpack.c.b16 %v274, %v266
    %v363 = vpack.c.b16 %v275, %v267
    %v364 = vpack.c.b16 %v276, %v268
    %v365 = vpack.c.b16 %v277, %v269
    %v366 = vpack.c.b16 %v278, %v270
    %v367 = vpack.c.b16 %v287, %v279
    %v368 = vpack.c.b16 %v288, %v280
    %v369 = vpack.c.b16 %v289, %v281
    %v370 = vpack.c.b16 %v290, %v282
    %v371 = vpack.c.b16 %v291, %v283
    %v372 = vpack.c.b16 %v292, %v284
    %v373 = vpack.c.b16 %v293, %v285
    %v374 = vpack.c.b16 %v294, %v286
    %v375 = vpack.c.b16 %v303, %v295
    %v376 = vpack.c.b16 %v304, %v296
    %v377 = vpack.c.b16 %v305, %v297
    %v378 = vpack.c.b16 %v306, %v298
    %v379 = vpack.c.b16 %v307, %v299
    %v380 = vpack.c.b16 %v308, %v300
    %v381 = vpack.c.b16 %v309, %v301
    %v382 = vpack.c.b16 %v310, %v302
    %v383 = vpack.c.b16 %v319, %v311
    %v384 = vpack.c.b16 %v320, %v312
    %v385 = vpack.c.b16 %v321, %v313
    %v386 = vpack.c.b16 %v322, %v314
    %v387 = vpack.c.b16 %v323, %v315
    %v388 = vpack.c.b16 %v324, %v316
    %v389 = vpack.c.b16 %v325, %v317
    %v390 = vpack.c.b16 %v326, %v318
    %455 = vmatpush.bf16.msra.mxu0 %v383
    %456 = vmatpush.bf16.msra.mxu0 %v375
    %457 = vmatpush.bf16.msra.mxu0 %v367
    %458 = vmatpush.bf16.msra.mxu0 %v359
    %459 = vmatpush.bf16.msra.mxu0 %v351
    %460 = vmatpush.bf16.msra.mxu0 %v343
    %461 = vmatpush.bf16.msra.mxu0 %v335
    %462 = vmatpush.bf16.msra.mxu0 %v327
    %463 = vmatmul.bf16.gmra.mxu0 %v70
    %v464 = vpop.f32.mrf.mxu0
    %v465 = vadd.f32 0.0, %v464
    %v466 = vpop.f32.mrf.mxu0
    %v467 = vadd.f32 0.0, %v466
    %468 = vdwg.mxu0
    %469 = vmatpush.bf16.msra.mxu0 %v384
    %470 = vmatpush.bf16.msra.mxu0 %v376
    %471 = vmatpush.bf16.msra.mxu0 %v368
    %472 = vmatpush.bf16.msra.mxu0 %v360
    %473 = vmatpush.bf16.msra.mxu0 %v352
    %474 = vmatpush.bf16.msra.mxu0 %v344
    %475 = vmatpush.bf16.msra.mxu0 %v336
    %476 = vmatpush.bf16.msra.mxu0 %v328
    %477 = vmatmul.bf16.gmra.mxu0 %v70
    %v478 = vpop.f32.mrf.mxu0
    %v479 = vadd.f32 0.0, %v478
    %v480 = vpop.f32.mrf.mxu0
    %v481 = vadd.f32 0.0, %v480
    %482 = vdwg.mxu0
    %483 = vmatpush.bf16.msra.mxu0 %v385
    %484 = vmatpush.bf16.msra.mxu0 %v377
    %485 = vmatpush.bf16.msra.mxu0 %v369
    %486 = vmatpush.bf16.msra.mxu0 %v361
    %487 = vmatpush.bf16.msra.mxu0 %v353
    %488 = vmatpush.bf16.msra.mxu0 %v345
    %489 = vmatpush.bf16.msra.mxu0 %v337
    %490 = vmatpush.bf16.msra.mxu0 %v329
    %491 = vmatmul.bf16.gmra.mxu0 %v70
    %v492 = vpop.f32.mrf.mxu0
    %v493 = vadd.f32 0.0, %v492
    %v494 = vpop.f32.mrf.mxu0
    %v495 = vadd.f32 0.0, %v494
    %496 = vdwg.mxu0
    %497 = vmatpush.bf16.msra.mxu0 %v386
    %498 = vmatpush.bf16.msra.mxu0 %v378
    %499 = vmatpush.bf16.msra.mxu0 %v370
    %500 = vmatpush.bf16.msra.mxu0 %v362
    %501 = vmatpush.bf16.msra.mxu0 %v354
    %502 = vmatpush.bf16.msra.mxu0 %v346
    %503 = vmatpush.bf16.msra.mxu0 %v338
    %504 = vmatpush.bf16.msra.mxu0 %v330
    %505 = vmatmul.bf16.gmra.mxu0 %v70
    %v506 = vpop.f32.mrf.mxu0
    %v507 = vadd.f32 0.0, %v506
    %v508 = vpop.f32.mrf.mxu0
    %v509 = vadd.f32 0.0, %v508
    %510 = vdwg.mxu0
    %511 = vmatpush.bf16.msra.mxu0 %v387
    %512 = vmatpush.bf16.msra.mxu0 %v379
    %513 = vmatpush.bf16.msra.mxu0 %v371
    %514 = vmatpush.bf16.msra.mxu0 %v363
    %515 = vmatpush.bf16.msra.mxu0 %v355
    %516 = vmatpush.bf16.msra.mxu0 %v347
    %517 = vmatpush.bf16.msra.mxu0 %v339
    %518 = vmatpush.bf16.msra.mxu0 %v331
    %519 = vmatmul.bf16.gmra.mxu0 %v70
    %v520 = vpop.f32.mrf.mxu0
    %v521 = vadd.f32 0.0, %v520
    %v522 = vpop.f32.mrf.mxu0
    %v523 = vadd.f32 0.0, %v522
    %524 = vdwg.mxu0
    %525 = vmatpush.bf16.msra.mxu0 %v388
    %526 = vmatpush.bf16.msra.mxu0 %v380
    %527 = vmatpush.bf16.msra.mxu0 %v372
    %528 = vmatpush.bf16.msra.mxu0 %v364
    %529 = vmatpush.bf16.msra.mxu0 %v356
    %530 = vmatpush.bf16.msra.mxu0 %v348
    %531 = vmatpush.bf16.msra.mxu0 %v340
    %532 = vmatpush.bf16.msra.mxu0 %v332
    %533 = vmatmul.bf16.gmra.mxu0 %v70
    %v534 = vpop.f32.mrf.mxu0
    %v535 = vadd.f32 0.0, %v534
    %v536 = vpop.f32.mrf.mxu0
    %v537 = vadd.f32 0.0, %v536
    %538 = vdwg.mxu0
    %539 = vmatpush.bf16.msra.mxu0 %v389
    %540 = vmatpush.bf16.msra.mxu0 %v381
    %541 = vmatpush.bf16.msra.mxu0 %v373
    %542 = vmatpush.bf16.msra.mxu0 %v365
    %543 = vmatpush.bf16.msra.mxu0 %v357
    %544 = vmatpush.bf16.msra.mxu0 %v349
    %545 = vmatpush.bf16.msra.mxu0 %v341
    %546 = vmatpush.bf16.msra.mxu0 %v333
    %547 = vmatmul.bf16.gmra.mxu0 %v70
    %v548 = vpop.f32.mrf.mxu0
    %v549 = vadd.f32 0.0, %v548
    %v550 = vpop.f32.mrf.mxu0
    %v551 = vadd.f32 0.0, %v550
    %552 = vdwg.mxu0
    %553 = vmatpush.bf16.msra.mxu0 %v390
    %554 = vmatpush.bf16.msra.mxu0 %v382
    %555 = vmatpush.bf16.msra.mxu0 %v374
    %556 = vmatpush.bf16.msra.mxu0 %v366
    %557 = vmatpush.bf16.msra.mxu0 %v358
    %558 = vmatpush.bf16.msra.mxu0 %v350
    %559 = vmatpush.bf16.msra.mxu0 %v342
    %560 = vmatpush.bf16.msra.mxu0 %v334
    %561 = vmatmul.bf16.gmra.mxu0 %v70
    %v562 = vpop.f32.mrf.mxu0
    %v563 = vadd.f32 0.0, %v562
    %v564 = vpop.f32.mrf.mxu0
    %v565 = vadd.f32 0.0, %v564
    %566 = vdwg.mxu0
    %v567 = vmax.f32 %v465, 0.0
    %v568 = vmax.f32 %v479, 0.0
    %v569 = vmax.f32 %v493, 0.0
    %v570 = vmax.f32 %v507, 0.0
    %v571 = vmax.f32 %v521, 0.0
    %v572 = vmax.f32 %v535, 0.0
    %v573 = vmax.f32 %v549, 0.0
    %v574 = vmax.f32 %v563, 0.0
    %v575 = vmax.f32 %v467, 0.0
    %v576 = vmax.f32 %v481, 0.0
    %v577 = vmax.f32 %v495, 0.0
    %v578 = vmax.f32 %v509, 0.0
    %v579 = vmax.f32 %v523, 0.0
    %v580 = vmax.f32 %v537, 0.0
    %v581 = vmax.f32 %v551, 0.0
    %v582 = vmax.f32 %v565, 0.0
    %v583 = vpack.c.bf16 %v575, %v567
    %v584 = vpack.c.bf16 %v576, %v568
    %v585 = vpack.c.bf16 %v577, %v569
    %v586 = vpack.c.bf16 %v578, %v570
    %v587 = vpack.c.bf16 %v579, %v571
    %v588 = vpack.c.bf16 %v580, %v572
    %v589 = vpack.c.bf16 %v581, %v573
    %v590 = vpack.c.bf16 %v582, %v574
    %v591 = vld [vmem:[#allocation7] sm:$0xf]
    %v592 = vld [vmem:[#allocation7 + $0x4] sm:$0xf]
    %v593 = vld [vmem:[#allocation7 + $0x8] sm:$0xf]
    %v594 = vld [vmem:[#allocation7 + $0xc] sm:$0xf]
    %v595 = vld [vmem:[#allocation7 + $0x10] sm:$0xf]
    %v596 = vld [vmem:[#allocation7 + $0x14] sm:$0xf]
    %v597 = vld [vmem:[#allocation7 + $0x18] sm:$0xf]
    %v598 = vld [vmem:[#allocation7 + $0x1c] sm:$0xf]
    %v599 = vld [vmem:[#allocation7 + $0x20] sm:$0xf]
    %v600 = vld [vmem:[#allocation7 + $0x24] sm:$0xf]
    %v601 = vld [vmem:[#allocation7 + $0x28] sm:$0xf]
    %v602 = vld [vmem:[#allocation7 + $0x2c] sm:$0xf]
    %v603 = vld [vmem:[#allocation7 + $0x30] sm:$0xf]
    %v604 = vld [vmem:[#allocation7 + $0x34] sm:$0xf]
    %v605 = vld [vmem:[#allocation7 + $0x38] sm:$0xf]
    %v606 = vld [vmem:[#allocation7 + $0x3c] sm:$0xf]
    %v607 = vld [vmem:[#allocation7 + $0x40] sm:$0xf]
    %v608 = vld [vmem:[#allocation7 + $0x44] sm:$0xf]
    %v609 = vld [vmem:[#allocation7 + $0x48] sm:$0xf]
    %v610 = vld [vmem:[#allocation7 + $0x4c] sm:$0xf]
    %v611 = vld [vmem:[#allocation7 + $0x50] sm:$0xf]
    %v612 = vld [vmem:[#allocation7 + $0x54] sm:$0xf]
    %v613 = vld [vmem:[#allocation7 + $0x58] sm:$0xf]
    %v614 = vld [vmem:[#allocation7 + $0x5c] sm:$0xf]
    %v615 = vld [vmem:[#allocation7 + $0x60] sm:$0xf]
    %v616 = vld [vmem:[#allocation7 + $0x64] sm:$0xf]
    %v617 = vld [vmem:[#allocation7 + $0x68] sm:$0xf]
    %v618 = vld [vmem:[#allocation7 + $0x6c] sm:$0xf]
    %v619 = vld [vmem:[#allocation7 + $0x70] sm:$0xf]
    %v620 = vld [vmem:[#allocation7 + $0x74] sm:$0xf]
    %v621 = vld [vmem:[#allocation7 + $0x78] sm:$0xf]
    %v622 = vld [vmem:[#allocation7 + $0x7c] sm:$0xf]
    %v623 = vld [vmem:[#allocation7 + $0x80] sm:$0xf]
    %v624 = vld [vmem:[#allocation7 + $0x84] sm:$0xf]
    %v625 = vld [vmem:[#allocation7 + $0x88] sm:$0xf]
    %v626 = vld [vmem:[#allocation7 + $0x8c] sm:$0xf]
    %v627 = vld [vmem:[#allocation7 + $0x90] sm:$0xf]
    %v628 = vld [vmem:[#allocation7 + $0x94] sm:$0xf]
    %v629 = vld [vmem:[#allocation7 + $0x98] sm:$0xf]
    %v630 = vld [vmem:[#allocation7 + $0x9c] sm:$0xf]
    %v631 = vld [vmem:[#allocation7 + $0xa0] sm:$0xf]
    %v632 = vld [vmem:[#allocation7 + $0xa4] sm:$0xf]
    %v633 = vld [vmem:[#allocation7 + $0xa8] sm:$0xf]
    %v634 = vld [vmem:[#allocation7 + $0xac] sm:$0xf]
    %v635 = vld [vmem:[#allocation7 + $0xb0] sm:$0xf]
    %v636 = vld [vmem:[#allocation7 + $0xb4] sm:$0xf]
    %v637 = vld [vmem:[#allocation7 + $0xb8] sm:$0xf]
    %v638 = vld [vmem:[#allocation7 + $0xbc] sm:$0xf]
    %v639 = vld [vmem:[#allocation7 + $0xc0] sm:$0xf]
    %v640 = vld [vmem:[#allocation7 + $0xc4] sm:$0xf]
    %v641 = vld [vmem:[#allocation7 + $0xc8] sm:$0xf]
    %v642 = vld [vmem:[#allocation7 + $0xcc] sm:$0xf]
    %v643 = vld [vmem:[#allocation7 + $0xd0] sm:$0xf]
    %v644 = vld [vmem:[#allocation7 + $0xd4] sm:$0xf]
    %v645 = vld [vmem:[#allocation7 + $0xd8] sm:$0xf]
    %v646 = vld [vmem:[#allocation7 + $0xdc] sm:$0xf]
    %v647 = vld [vmem:[#allocation7 + $0xe0] sm:$0xf]
    %v648 = vld [vmem:[#allocation7 + $0xe4] sm:$0xf]
    %v649 = vld [vmem:[#allocation7 + $0xe8] sm:$0xf]
    %v650 = vld [vmem:[#allocation7 + $0xec] sm:$0xf]
    %v651 = vld [vmem:[#allocation7 + $0xf0] sm:$0xf]
    %v652 = vld [vmem:[#allocation7 + $0xf4] sm:$0xf]
    %v653 = vld [vmem:[#allocation7 + $0xf8] sm:$0xf]
    %v654 = vld [vmem:[#allocation7 + $0xfc] sm:$0xf]
    %v655 = vld [vmem:[#allocation7 + $0x100] sm:$0xf]
    %v656 = vld [vmem:[#allocation7 + $0x104] sm:$0xf]
    %v657 = vld [vmem:[#allocation7 + $0x108] sm:$0xf]
    %v658 = vld [vmem:[#allocation7 + $0x10c] sm:$0xf]
    %v659 = vld [vmem:[#allocation7 + $0x110] sm:$0xf]
    %v660 = vld [vmem:[#allocation7 + $0x114] sm:$0xf]
    %v661 = vld [vmem:[#allocation7 + $0x118] sm:$0xf]
    %v662 = vld [vmem:[#allocation7 + $0x11c] sm:$0xf]
    %v663 = vld [vmem:[#allocation7 + $0x120] sm:$0xf]
    %v664 = vld [vmem:[#allocation7 + $0x124] sm:$0xf]
    %v665 = vld [vmem:[#allocation7 + $0x128] sm:$0xf]
    %v666 = vld [vmem:[#allocation7 + $0x12c] sm:$0xf]
    %v667 = vld [vmem:[#allocation7 + $0x130] sm:$0xf]
    %v668 = vld [vmem:[#allocation7 + $0x134] sm:$0xf]
    %v669 = vld [vmem:[#allocation7 + $0x138] sm:$0xf]
    %v670 = vld [vmem:[#allocation7 + $0x13c] sm:$0xf]
    %v671 = vld [vmem:[#allocation7 + $0x140] sm:$0xf]
    %v672 = vld [vmem:[#allocation7 + $0x144] sm:$0xf]
    %v673 = vld [vmem:[#allocation7 + $0x148] sm:$0xf]
    %v674 = vld [vmem:[#allocation7 + $0x14c] sm:$0xf]
    %v675 = vld [vmem:[#allocation7 + $0x150] sm:$0xf]
    %v676 = vld [vmem:[#allocation7 + $0x154] sm:$0xf]
    %v677 = vld [vmem:[#allocation7 + $0x158] sm:$0xf]
    %v678 = vld [vmem:[#allocation7 + $0x15c] sm:$0xf]
    %v679 = vld [vmem:[#allocation7 + $0x160] sm:$0xf]
    %v680 = vld [vmem:[#allocation7 + $0x164] sm:$0xf]
    %v681 = vld [vmem:[#allocation7 + $0x168] sm:$0xf]
    %v682 = vld [vmem:[#allocation7 + $0x16c] sm:$0xf]
    %v683 = vld [vmem:[#allocation7 + $0x170] sm:$0xf]
    %v684 = vld [vmem:[#allocation7 + $0x174] sm:$0xf]
    %v685 = vld [vmem:[#allocation7 + $0x178] sm:$0xf]
    %v686 = vld [vmem:[#allocation7 + $0x17c] sm:$0xf]
    %v687 = vld [vmem:[#allocation7 + $0x180] sm:$0xf]
    %v688 = vld [vmem:[#allocation7 + $0x184] sm:$0xf]
    %v689 = vld [vmem:[#allocation7 + $0x188] sm:$0xf]
    %v690 = vld [vmem:[#allocation7 + $0x18c] sm:$0xf]
    %v691 = vld [vmem:[#allocation7 + $0x190] sm:$0xf]
    %v692 = vld [vmem:[#allocation7 + $0x194] sm:$0xf]
    %v693 = vld [vmem:[#allocation7 + $0x198] sm:$0xf]
    %v694 = vld [vmem:[#allocation7 + $0x19c] sm:$0xf]
    %v695 = vld [vmem:[#allocation7 + $0x1a0] sm:$0xf]
    %v696 = vld [vmem:[#allocation7 + $0x1a4] sm:$0xf]
    %v697 = vld [vmem:[#allocation7 + $0x1a8] sm:$0xf]
    %v698 = vld [vmem:[#allocation7 + $0x1ac] sm:$0xf]
    %v699 = vld [vmem:[#allocation7 + $0x1b0] sm:$0xf]
    %v700 = vld [vmem:[#allocation7 + $0x1b4] sm:$0xf]
    %v701 = vld [vmem:[#allocation7 + $0x1b8] sm:$0xf]
    %v702 = vld [vmem:[#allocation7 + $0x1bc] sm:$0xf]
    %v703 = vld [vmem:[#allocation7 + $0x1c0] sm:$0xf]
    %v704 = vld [vmem:[#allocation7 + $0x1c4] sm:$0xf]
    %v705 = vld [vmem:[#allocation7 + $0x1c8] sm:$0xf]
    %v706 = vld [vmem:[#allocation7 + $0x1cc] sm:$0xf]
    %v707 = vld [vmem:[#allocation7 + $0x1d0] sm:$0xf]
    %v708 = vld [vmem:[#allocation7 + $0x1d4] sm:$0xf]
    %v709 = vld [vmem:[#allocation7 + $0x1d8] sm:$0xf]
    %v710 = vld [vmem:[#allocation7 + $0x1dc] sm:$0xf]
    %v711 = vld [vmem:[#allocation7 + $0x1e0] sm:$0xf]
    %v712 = vld [vmem:[#allocation7 + $0x1e4] sm:$0xf]
    %v713 = vld [vmem:[#allocation7 + $0x1e8] sm:$0xf]
    %v714 = vld [vmem:[#allocation7 + $0x1ec] sm:$0xf]
    %v715 = vld [vmem:[#allocation7 + $0x1f0] sm:$0xf]
    %v716 = vld [vmem:[#allocation7 + $0x1f4] sm:$0xf]
    %v717 = vld [vmem:[#allocation7 + $0x1f8] sm:$0xf]
    %v718 = vld [vmem:[#allocation7 + $0x1fc] sm:$0xf]
    %v847 = vunpack.c.l.b16 %v591
    %v848 = vunpack.c.l.b16 %v592
    %v849 = vunpack.c.l.b16 %v593
    %v850 = vunpack.c.l.b16 %v594
    %v851 = vunpack.c.l.b16 %v595
    %v852 = vunpack.c.l.b16 %v596
    %v853 = vunpack.c.l.b16 %v597
    %v854 = vunpack.c.l.b16 %v598
    %v855 = vunpack.c.l.b16 %v599
    %v856 = vunpack.c.l.b16 %v600
    %v857 = vunpack.c.l.b16 %v601
    %v858 = vunpack.c.l.b16 %v602
    %v859 = vunpack.c.l.b16 %v603
    %v860 = vunpack.c.l.b16 %v604
    %v861 = vunpack.c.l.b16 %v605
    %v862 = vunpack.c.l.b16 %v606
    %v863 = vunpack.c.l.b16 %v607
    %v864 = vunpack.c.l.b16 %v608
    %v865 = vunpack.c.l.b16 %v609
    %v866 = vunpack.c.l.b16 %v610
    %v867 = vunpack.c.l.b16 %v611
    %v868 = vunpack.c.l.b16 %v612
    %v869 = vunpack.c.l.b16 %v613
    %v870 = vunpack.c.l.b16 %v614
    %v871 = vunpack.c.l.b16 %v615
    %v872 = vunpack.c.l.b16 %v616
    %v873 = vunpack.c.l.b16 %v617
    %v874 = vunpack.c.l.b16 %v618
    %v875 = vunpack.c.l.b16 %v619
    %v876 = vunpack.c.l.b16 %v620
    %v877 = vunpack.c.l.b16 %v621
    %v878 = vunpack.c.l.b16 %v622
    %v879 = vunpack.c.l.b16 %v623
    %v880 = vunpack.c.l.b16 %v624
    %v881 = vunpack.c.l.b16 %v625
    %v882 = vunpack.c.l.b16 %v626
    %v883 = vunpack.c.l.b16 %v627
    %v884 = vunpack.c.l.b16 %v628
    %v885 = vunpack.c.l.b16 %v629
    %v886 = vunpack.c.l.b16 %v630
    %v887 = vunpack.c.l.b16 %v631
    %v888 = vunpack.c.l.b16 %v632
    %v889 = vunpack.c.l.b16 %v633
    %v890 = vunpack.c.l.b16 %v634
    %v891 = vunpack.c.l.b16 %v635
    %v892 = vunpack.c.l.b16 %v636
    %v893 = vunpack.c.l.b16 %v637
    %v894 = vunpack.c.l.b16 %v638
    %v895 = vunpack.c.l.b16 %v639
    %v896 = vunpack.c.l.b16 %v640
    %v897 = vunpack.c.l.b16 %v641
    %v898 = vunpack.c.l.b16 %v642
    %v899 = vunpack.c.l.b16 %v643
    %v900 = vunpack.c.l.b16 %v644
    %v901 = vunpack.c.l.b16 %v645
    %v902 = vunpack.c.l.b16 %v646
    %v903 = vunpack.c.l.b16 %v647
    %v904 = vunpack.c.l.b16 %v648
    %v905 = vunpack.c.l.b16 %v649
    %v906 = vunpack.c.l.b16 %v650
    %v907 = vunpack.c.l.b16 %v651
    %v908 = vunpack.c.l.b16 %v652
    %v909 = vunpack.c.l.b16 %v653
    %v910 = vunpack.c.l.b16 %v654
    %v911 = vunpack.c.l.b16 %v655
    %v912 = vunpack.c.l.b16 %v656
    %v913 = vunpack.c.l.b16 %v657
    %v914 = vunpack.c.l.b16 %v658
    %v915 = vunpack.c.l.b16 %v659
    %v916 = vunpack.c.l.b16 %v660
    %v917 = vunpack.c.l.b16 %v661
    %v918 = vunpack.c.l.b16 %v662
    %v919 = vunpack.c.l.b16 %v663
    %v920 = vunpack.c.l.b16 %v664
    %v921 = vunpack.c.l.b16 %v665
    %v922 = vunpack.c.l.b16 %v666
    %v923 = vunpack.c.l.b16 %v667
    %v924 = vunpack.c.l.b16 %v668
    %v925 = vunpack.c.l.b16 %v669
    %v926 = vunpack.c.l.b16 %v670
    %v927 = vunpack.c.l.b16 %v671
    %v928 = vunpack.c.l.b16 %v672
    %v929 = vunpack.c.l.b16 %v673
    %v930 = vunpack.c.l.b16 %v674
    %v931 = vunpack.c.l.b16 %v675
    %v932 = vunpack.c.l.b16 %v676
    %v933 = vunpack.c.l.b16 %v677
    %v934 = vunpack.c.l.b16 %v678
    %v935 = vunpack.c.l.b16 %v679
    %v936 = vunpack.c.l.b16 %v680
    %v937 = vunpack.c.l.b16 %v681
    %v938 = vunpack.c.l.b16 %v682
    %v939 = vunpack.c.l.b16 %v683
    %v940 = vunpack.c.l.b16 %v684
    %v941 = vunpack.c.l.b16 %v685
    %v942 = vunpack.c.l.b16 %v686
    %v943 = vunpack.c.l.b16 %v687
    %v944 = vunpack.c.l.b16 %v688
    %v945 = vunpack.c.l.b16 %v689
    %v946 = vunpack.c.l.b16 %v690
    %v947 = vunpack.c.l.b16 %v691
    %v948 = vunpack.c.l.b16 %v692
    %v949 = vunpack.c.l.b16 %v693
    %v950 = vunpack.c.l.b16 %v694
    %v951 = vunpack.c.l.b16 %v695
    %v952 = vunpack.c.l.b16 %v696
    %v953 = vunpack.c.l.b16 %v697
    %v954 = vunpack.c.l.b16 %v698
    %v955 = vunpack.c.l.b16 %v699
    %v956 = vunpack.c.l.b16 %v700
    %v957 = vunpack.c.l.b16 %v701
    %v958 = vunpack.c.l.b16 %v702
    %v959 = vunpack.c.l.b16 %v703
    %v960 = vunpack.c.l.b16 %v704
    %v961 = vunpack.c.l.b16 %v705
    %v962 = vunpack.c.l.b16 %v706
    %v963 = vunpack.c.l.b16 %v707
    %v964 = vunpack.c.l.b16 %v708
    %v965 = vunpack.c.l.b16 %v709
    %v966 = vunpack.c.l.b16 %v710
    %v967 = vunpack.c.l.b16 %v711
    %v968 = vunpack.c.l.b16 %v712
    %v969 = vunpack.c.l.b16 %v713
    %v970 = vunpack.c.l.b16 %v714
    %v971 = vunpack.c.l.b16 %v715
    %v972 = vunpack.c.l.b16 %v716
    %v973 = vunpack.c.l.b16 %v717
    %v974 = vunpack.c.l.b16 %v718
    %v975 = vpack.c.b16 %v848, %v847
    %v976 = vpack.c.b16 %v850, %v849
    %v977 = vpack.c.b16 %v852, %v851
    %v978 = vpack.c.b16 %v854, %v853
    %v979 = vpack.c.b16 %v856, %v855
    %v980 = vpack.c.b16 %v858, %v857
    %v981 = vpack.c.b16 %v860, %v859
    %v982 = vpack.c.b16 %v862, %v861
    %v983 = vpack.c.b16 %v864, %v863
    %v984 = vpack.c.b16 %v866, %v865
    %v985 = vpack.c.b16 %v868, %v867
    %v986 = vpack.c.b16 %v870, %v869
    %v987 = vpack.c.b16 %v872, %v871
    %v988 = vpack.c.b16 %v874, %v873
    %v989 = vpack.c.b16 %v876, %v875
    %v990 = vpack.c.b16 %v878, %v877
    %v991 = vpack.c.b16 %v880, %v879
    %v992 = vpack.c.b16 %v882, %v881
    %v993 = vpack.c.b16 %v884, %v883
    %v994 = vpack.c.b16 %v886, %v885
    %v995 = vpack.c.b16 %v888, %v887
    %v996 = vpack.c.b16 %v890, %v889
    %v997 = vpack.c.b16 %v892, %v891
    %v998 = vpack.c.b16 %v894, %v893
    %v999 = vpack.c.b16 %v896, %v895
    %v1000 = vpack.c.b16 %v898, %v897
    %v1001 = vpack.c.b16 %v900, %v899
    %v1002 = vpack.c.b16 %v902, %v901
    %v1003 = vpack.c.b16 %v904, %v903
    %v1004 = vpack.c.b16 %v906, %v905
    %v1005 = vpack.c.b16 %v908, %v907
    %v1006 = vpack.c.b16 %v910, %v909
    %v1007 = vpack.c.b16 %v912, %v911
    %v1008 = vpack.c.b16 %v914, %v913
    %v1009 = vpack.c.b16 %v916, %v915
    %v1010 = vpack.c.b16 %v918, %v917
    %v1011 = vpack.c.b16 %v920, %v919
    %v1012 = vpack.c.b16 %v922, %v921
    %v1013 = vpack.c.b16 %v924, %v923
    %v1014 = vpack.c.b16 %v926, %v925
    %v1015 = vpack.c.b16 %v928, %v927
    %v1016 = vpack.c.b16 %v930, %v929
    %v1017 = vpack.c.b16 %v932, %v931
    %v1018 = vpack.c.b16 %v934, %v933
    %v1019 = vpack.c.b16 %v936, %v935
    %v1020 = vpack.c.b16 %v938, %v937
    %v1021 = vpack.c.b16 %v940, %v939
    %v1022 = vpack.c.b16 %v942, %v941
    %v1023 = vpack.c.b16 %v944, %v943
    %v1024 = vpack.c.b16 %v946, %v945
    %v1025 = vpack.c.b16 %v948, %v947
    %v1026 = vpack.c.b16 %v950, %v949
    %v1027 = vpack.c.b16 %v952, %v951
    %v1028 = vpack.c.b16 %v954, %v953
    %v1029 = vpack.c.b16 %v956, %v955
    %v1030 = vpack.c.b16 %v958, %v957
    %v1031 = vpack.c.b16 %v960, %v959
    %v1032 = vpack.c.b16 %v962, %v961
    %v1033 = vpack.c.b16 %v964, %v963
    %v1034 = vpack.c.b16 %v966, %v965
    %v1035 = vpack.c.b16 %v968, %v967
    %v1036 = vpack.c.b16 %v970, %v969
    %v1037 = vpack.c.b16 %v972, %v971
    %v1038 = vpack.c.b16 %v974, %v973
    %1103 = vmatpush.bf16.msra.mxu0 %v982
    %1104 = vmatpush.bf16.msra.mxu0 %v981
    %1105 = vmatpush.bf16.msra.mxu0 %v980
    %1106 = vmatpush.bf16.msra.mxu0 %v979
    %1107 = vmatpush.bf16.msra.mxu0 %v978
    %1108 = vmatpush.bf16.msra.mxu0 %v977
    %1109 = vmatpush.bf16.msra.mxu0 %v976
    %1110 = vmatpush.bf16.msra.mxu0 %v975
    %1111 = vmatmul.bf16.gmra.mxu0 %v583
    %v1112 = vpop.f32.mrf.mxu0
    %v1113 = vadd.f32 %v68, %v1112
    %v1114 = vpop.f32.mrf.mxu0
    %v1115 = vadd.f32 %v69, %v1114
    %1116 = vdwg.mxu0
    %1117 = vmatpush.bf16.msra.mxu0 %v990
    %1118 = vmatpush.bf16.msra.mxu0 %v989
    %1119 = vmatpush.bf16.msra.mxu0 %v988
    %1120 = vmatpush.bf16.msra.mxu0 %v987
    %1121 = vmatpush.bf16.msra.mxu0 %v986
    %1122 = vmatpush.bf16.msra.mxu0 %v985
    %1123 = vmatpush.bf16.msra.mxu0 %v984
    %1124 = vmatpush.bf16.msra.mxu0 %v983
    %1125 = vmatmul.bf16.gmra.mxu0 %v584
    %v1126 = vpop.f32.mrf.mxu0
    %v1127 = vadd.f32 %v1113, %v1126
    %v1128 = vpop.f32.mrf.mxu0
    %v1129 = vadd.f32 %v1115, %v1128
    %1130 = vdwg.mxu0
    %1131 = vmatpush.bf16.msra.mxu0 %v998
    %1132 = vmatpush.bf16.msra.mxu0 %v997
    %1133 = vmatpush.bf16.msra.mxu0 %v996
    %1134 = vmatpush.bf16.msra.mxu0 %v995
    %1135 = vmatpush.bf16.msra.mxu0 %v994
    %1136 = vmatpush.bf16.msra.mxu0 %v993
    %1137 = vmatpush.bf16.msra.mxu0 %v992
    %1138 = vmatpush.bf16.msra.mxu0 %v991
    %1139 = vmatmul.bf16.gmra.mxu0 %v585
    %v1140 = vpop.f32.mrf.mxu0
    %v1141 = vadd.f32 %v1127, %v1140
    %v1142 = vpop.f32.mrf.mxu0
    %v1143 = vadd.f32 %v1129, %v1142
    %1144 = vdwg.mxu0
    %1145 = vmatpush.bf16.msra.mxu0 %v1006
    %1146 = vmatpush.bf16.msra.mxu0 %v1005
    %1147 = vmatpush.bf16.msra.mxu0 %v1004
    %1148 = vmatpush.bf16.msra.mxu0 %v1003
    %1149 = vmatpush.bf16.msra.mxu0 %v1002
    %1150 = vmatpush.bf16.msra.mxu0 %v1001
    %1151 = vmatpush.bf16.msra.mxu0 %v1000
    %1152 = vmatpush.bf16.msra.mxu0 %v999
    %1153 = vmatmul.bf16.gmra.mxu0 %v586
    %v1154 = vpop.f32.mrf.mxu0
    %v1155 = vadd.f32 %v1141, %v1154
    %v1156 = vpop.f32.mrf.mxu0
    %v1157 = vadd.f32 %v1143, %v1156
    %1158 = vdwg.mxu0
    %1159 = vmatpush.bf16.msra.mxu0 %v1014
    %1160 = vmatpush.bf16.msra.mxu0 %v1013
    %1161 = vmatpush.bf16.msra.mxu0 %v1012
    %1162 = vmatpush.bf16.msra.mxu0 %v1011
    %1163 = vmatpush.bf16.msra.mxu0 %v1010
    %1164 = vmatpush.bf16.msra.mxu0 %v1009
    %1165 = vmatpush.bf16.msra.mxu0 %v1008
    %1166 = vmatpush.bf16.msra.mxu0 %v1007
    %1167 = vmatmul.bf16.gmra.mxu0 %v587
    %v1168 = vpop.f32.mrf.mxu0
    %v1169 = vadd.f32 %v1155, %v1168
    %v1170 = vpop.f32.mrf.mxu0
    %v1171 = vadd.f32 %v1157, %v1170
    %1172 = vdwg.mxu0
    %1173 = vmatpush.bf16.msra.mxu0 %v1022
    %1174 = vmatpush.bf16.msra.mxu0 %v1021
    %1175 = vmatpush.bf16.msra.mxu0 %v1020
    %1176 = vmatpush.bf16.msra.mxu0 %v1019
    %1177 = vmatpush.bf16.msra.mxu0 %v1018
    %1178 = vmatpush.bf16.msra.mxu0 %v1017
    %1179 = vmatpush.bf16.msra.mxu0 %v1016
    %1180 = vmatpush.bf16.msra.mxu0 %v1015
    %1181 = vmatmul.bf16.gmra.mxu0 %v588
    %v1182 = vpop.f32.mrf.mxu0
    %v1183 = vadd.f32 %v1169, %v1182
    %v1184 = vpop.f32.mrf.mxu0
    %v1185 = vadd.f32 %v1171, %v1184
    %1186 = vdwg.mxu0
    %1187 = vmatpush.bf16.msra.mxu0 %v1030
    %1188 = vmatpush.bf16.msra.mxu0 %v1029
    %1189 = vmatpush.bf16.msra.mxu0 %v1028
    %1190 = vmatpush.bf16.msra.mxu0 %v1027
    %1191 = vmatpush.bf16.msra.mxu0 %v1026
    %1192 = vmatpush.bf16.msra.mxu0 %v1025
    %1193 = vmatpush.bf16.msra.mxu0 %v1024
    %1194 = vmatpush.bf16.msra.mxu0 %v1023
    %1195 = vmatmul.bf16.gmra.mxu0 %v589
    %v1196 = vpop.f32.mrf.mxu0
    %v1197 = vadd.f32 %v1183, %v1196
    %v1198 = vpop.f32.mrf.mxu0
    %v1199 = vadd.f32 %v1185, %v1198
    %1200 = vdwg.mxu0
    %1201 = vmatpush.bf16.msra.mxu0 %v1038
    %1202 = vmatpush.bf16.msra.mxu0 %v1037
    %1203 = vmatpush.bf16.msra.mxu0 %v1036
    %1204 = vmatpush.bf16.msra.mxu0 %v1035
    %1205 = vmatpush.bf16.msra.mxu0 %v1034
    %1206 = vmatpush.bf16.msra.mxu0 %v1033
    %1207 = vmatpush.bf16.msra.mxu0 %v1032
    %1208 = vmatpush.bf16.msra.mxu0 %v1031
    %1209 = vmatmul.bf16.gmra.mxu0 %v590
    %v1210 = vpop.f32.mrf.mxu0
    %v1211 = vadd.f32 %v1197, %v1210
    %v1212 = vpop.f32.mrf.mxu0
    %v1213 = vadd.f32 %v1199, %v1212
    %1214 = vdwg.mxu0
    %1215 = vadd.xlane.f32.xlu0 %v1211
    %v1216 = vpop.xlane.xlu0 %1215
    %1217 = vadd.xlane.f32.xlu0 %v1213
    %v1218 = vpop.xlane.xlu0 %1217
    %v1219 = vmul.f32 %v1216, 0.0078125
    %v1220 = vmul.f32 %v1218, 0.0078125
    %v1221 = vmul.f32 %v1211, %v1211
    %v1222 = vmul.f32 %v1213, %v1213
    %1223 = vadd.xlane.f32.xlu0 %v1221
    %v1224 = vpop.xlane.xlu0 %1223
    %1225 = vadd.xlane.f32.xlu0 %v1222
    %v1226 = vpop.xlane.xlu0 %1225
    %v1227 = vmul.f32 %v1224, 0.0078125
    %v1228 = vmul.f32 %v1226, 0.0078125
    %v1229 = vmul.f32 %v1219, %v1219
    %v1230 = vmul.f32 %v1220, %v1220
    %v1231 = vsub.f32 %v1227, %v1229
    %v1232 = vsub.f32 %v1228, %v1230
    %v1233 = vadd.f32 %v1231, 1e-06
    %v1234 = vadd.f32 %v1232, 1e-06
    %v1235 = vrsqrt.pop %v1233
    %v1236 = vmul.f32 %v1235, %v1233
    %v1237 = vmul.f32 %v1236, %v1235
    %v1238 = vmul.f32 0.5, %v1237
    %v1239 = vsub.f32 1.5, %v1238
    %v1240 = vmul.f32 %v1235, %v1239
    %vm1241 = vweird.f32 %v1233
    %vm1242 = vweird.f32 %v1235
    %vm1243 = vmor %vm1241, %vm1242
    %v1244 = vsel %vm1243, %v1235, %v1240
    %v1245 = vrsqrt.pop %v1234
    %v1246 = vmul.f32 %v1245, %v1234
    %v1247 = vmul.f32 %v1246, %v1245
    %v1248 = vmul.f32 0.5, %v1247
    %v1249 = vsub.f32 1.5, %v1248
    %v1250 = vmul.f32 %v1245, %v1249
    %vm1251 = vweird.f32 %v1234
    %vm1252 = vweird.f32 %v1245
    %vm1253 = vmor %vm1251, %vm1252
    %v1254 = vsel %vm1253, %v1245, %v1250
    %v1255 = vld [vmem:[%s3] sm:$0x1]
    %v1257 = vperm.slane %v1255, 0
    %v1259 = vmul.f32 %v1244, %v1257
    %v1260 = vmul.f32 %v1254, %v1257
    %v1261 = vsub.f32 %v1211, %v1219
    %v1262 = vsub.f32 %v1213, %v1220
    %v1263 = vmul.f32 %v1261, %v1259
    %v1264 = vmul.f32 %v1262, %v1260
    %v1265 = vld [vmem:[%s4] sm:$0x1]
    %v1267 = vperm.slane %v1265, 0
    %v1269 = vadd.f32 %v1263, %v1267
    %v1270 = vadd.f32 %v1264, %v1267
    %1271 = vst [vmem:[#allocation8] sm:$0xff] %v1269
    %1272 = vst [vmem:[#allocation8 + $0x8] sm:$0xff] %v1270
    // Predicated region
    $region34: #{tpu_custom_call.1} parent=1 // pred_check
      _
    $region35: #{tpu_custom_call.1} parent=1 // pred_check_branch
      %1274 = sbr.rel (0) target = $region37
    $region36: #{tpu_custom_call.1} parent=1 // pred_region
      %1276 = vsyncadd [#allocation4], 0
      %s1277 = sshll.u32 [#allocation8], 4
      %s1278 = int_to_ptr.vmem [resolvable:$true] %s1277
      %s1279 = sshll.u32 %s5, 4
      %s1280 = int_to_ptr.hbm [resolvable:$true] %s1279
      %1285 = dma.vmem_to_hbm [thread:$0]  %s1278, 256, %s1280, [#allocation4], 128, 128, 8
    $region37: #{tpu_custom_call.1} parent=1 // pred_fallthru
      _
    // Predicated region
    $region38: #{tpu_custom_call.1} parent=1 // pred_check
      _
    $region39: #{tpu_custom_call.1} parent=1 // pred_check_branch
      %1287 = sbr.rel (0) target = $region41
    $region40: #{tpu_custom_call.1} parent=1 // pred_region
      %1289 = dma.done [#allocation4], 256
    $region41: #{tpu_custom_call.1} parent=1 // pred_fallthru
      _
    %1290 = vsyncpa [#allocation3], 1
    %1291 = vsyncpa [#allocation6], 1
    %1292 = vsyncpa [#allocation4], 1

</llo_original>
